<compile_context>
chip_gen: v7x
topology: tpu7x:2x2x1
jax: 0.10.0
libtpu: 0.0.40
codegen_flags: <defaults>
</compile_context>

<pallas_src>
import math

import jax
import jax.numpy as jnp
from jax.experimental import pallas as pl
from jax.experimental.pallas import tpu as pltpu


def _copy_kernel(x_ref, o_ref):
    # Identity copy of the current lane-dense block.
    o_ref[...] = x_ref[...]


def _pick_lanes(total: int, max_lanes: int):
    """Largest lane count (multiple of 128, <= max_lanes) dividing `total`,
    preferring a row count that is a multiple of 8 (full sublane occupancy)."""
    cap = min(max_lanes, (total // 128) * 128)
    lanes = cap
    while lanes >= 128:  # pass 1: rows % 8 == 0 -> full (8,128) vregs
        if total % lanes == 0 and (total // lanes) % 8 == 0:
            return lanes
        lanes -= 128
    lanes = cap
    while lanes >= 128:  # pass 2: any exact divisor
        if total % lanes == 0:
            return lanes
        lanes -= 128
    return None


def flatten_pallas(x: jnp.ndarray, *, max_lanes: int = 2048,
                   max_block_bytes: int = 4 << 20) -> jnp.ndarray:
    """Equivalent of torch.flatten(x, start_dim=1, end_dim=-1)."""
    n = x.shape[0]
    f = math.prod(x.shape[1:]) if x.ndim > 1 else 1
    total = n * f
    itemsize = jnp.dtype(x.dtype).itemsize

    lanes = _pick_lanes(total, max_lanes)

    if lanes is None:
        # Ragged fallback: one full-array block (block dims == array dims), no pad.
        x2d = x.reshape(n, f)
        return pl.pallas_call(
            _copy_kernel,
            out_shape=jax.ShapeDtypeStruct((n, f), x.dtype),
            grid_spec=pltpu.PrefetchScalarGridSpec(
                num_scalar_prefetch=0,
                grid=(1,),
                in_specs=[pl.BlockSpec((n, f), lambda i: (0, 0))],
                out_specs=pl.BlockSpec((n, f), lambda i: (0, 0)),
            ),
            compiler_params=pltpu.CompilerParams(
                dimension_semantics=("arbitrary",)),
        )(x2d)

    rows = total // lanes
    # Row tile: multiple of 8, capped so one block stays <= max_block_bytes
    # (so 2 bufs x (in + out) x block <= 4x max_block_bytes, under scoped VMEM).
    row_bytes = lanes * itemsize
    max_rows = max(8, (max_block_bytes // row_bytes) // 8 * 8)
    if rows <= max_rows:
        tile_rows = rows                     # full dim -> always legal
    else:
        tile_rows = max_rows
        while tile_rows > 0 and rows % tile_rows != 0:
            tile_rows -= 8
        if tile_rows <= 0:
            tile_rows = rows                 # fall back to full-dim block

    xv = x.reshape(rows, lanes)              # metadata-only view of the buffer
    out = pl.pallas_call(
        _copy_kernel,
        out_shape=jax.ShapeDtypeStruct((rows, lanes), x.dtype),
        grid_spec=pltpu.PrefetchScalarGridSpec(
            num_scalar_prefetch=0,
            grid=(rows // tile_rows,),
            in_specs=[pl.BlockSpec((tile_rows, lanes), lambda i: (i, 0))],
            out_specs=pl.BlockSpec((tile_rows, lanes), lambda i: (i, 0)),
        ),
        compiler_params=pltpu.CompilerParams(
            dimension_semantics=("parallel",)),
    )(xv)
    return out.reshape(n, f)                 # metadata-only view of the output


if __name__ == "__main__":
    key = jax.random.PRNGKey(0)

    # Main case: NCHW input, batch=2, channels=4, spatial=16x16.
    x = jax.random.normal(key, (2, 4, 16, 16), dtype=jnp.float32)
    y = jax.block_until_ready(flatten_pallas(x))
    y_ref = x.reshape(x.shape[0], -1)
    assert y.shape == (2, 4 * 16 * 16), y.shape
    assert y.dtype == x.dtype
    assert jnp.array_equal(y, y_ref)

    # Ragged case (feature count not a multiple of 128) exercises the fallback.
    x2 = jax.random.normal(key, (2, 3, 5, 7), dtype=jnp.float32)
    y2 = jax.block_until_ready(flatten_pallas(x2))
    assert y2.shape == (2, 3 * 5 * 7)
    assert jnp.array_equal(y2, x2.reshape(2, -1))

    print("KERNEL_OK")
</pallas_src>

<mosaic_0001>
module attributes {stable_mosaic.version = 11 : i64} {
  func.func @_copy_kernel(%arg0: i32, %arg1: memref<8x256xf32, #tpu.memory_space<vmem>>, %arg2: memref<8x256xf32, #tpu.memory_space<vmem>>) attributes {dimension_semantics = [#tpu.dimension_semantics<parallel>], iteration_bounds = array<i64: 1>, scalar_prefetch = 0 : i64, scratch_operands = 0 : i64, tpu.core_type = #tpu.core_type<tc>, window_params = [{transform_indices = @transform_0, window_bounds = array<i64: 8, 256>}, {transform_indices = @transform_1, window_bounds = array<i64: 8, 256>}]} {
    %c0 = arith.constant 0 : index
    %c0_0 = arith.constant 0 : index
    %0 = vector.load %arg1[%c0, %c0_0] : memref<8x256xf32, #tpu.memory_space<vmem>>, vector<8x256xf32>
    %c0_1 = arith.constant 0 : index
    %c0_2 = arith.constant 0 : index
    %1 = vector.load %arg2[%c0_1, %c0_2] : memref<8x256xf32, #tpu.memory_space<vmem>>, vector<8x256xf32>
    tpu.vector_store %arg2[%c0_1, %c0_2], %0 {strides = array<i32>} : memref<8x256xf32, #tpu.memory_space<vmem>>, vector<8x256xf32>,
    return
  }
  func.func @transform_0(%arg0: i32) -> (i32, i32) {
    %c0_i32 = arith.constant 0 : i32
    %c0_i32_0 = arith.constant 0 : i32
    return %arg0, %c0_i32 : i32, i32
  }
  func.func @transform_1(%arg0: i32) -> (i32, i32) {
    %c0_i32 = arith.constant 0 : i32
    %c0_i32_0 = arith.constant 0 : i32
    return %arg0, %c0_i32 : i32, i32
  }
}

</mosaic_0001>

<llo_original>
// kernel: tpu_custom_call.1
$region0: #{tpu_custom_call.1}
  #allocation0 [shape = 'u32[]', space=smem, size = 0x4, offset = 0x4, fixed_abs, tag = 'smem constant byte address 0x4 - core index']
  #allocation1 [shape = 'u32[144,128]{1,0:T(1,128)}', space=vmem, size = 0x12000, scoped, tag = 'internal scratch']
  %s0 = inlined_call_operand.hbm [shape: f32[8,256], index: 0, kind: input, shape index: {}]
  %s1 = inlined_call_operand.hbm [shape: f32[8,256], index: 1, kind: output, shape index: {}]
  %s2 = sld [smem:[#allocation0]]
  $region18: #{tpu_custom_call.1} parent=0
    _
  %s4 = ssub.s32 1, %s2
  %s5 = scalar_select 0, %s4, %s2
  $region1: #{tpu_custom_call.1} parent=0
    #allocation2 [shape = 'u8[8192]{0}', space=vmem, size = 0x2000, scoped, tag = 'input window, operand 0, single buffered']
    #allocation3 [shape = 's32[1]{0}', space=sflag, size = 0x4, scoped, tag = 'scoped memory for tpu_custom_call.1']
    #allocation4 [shape = 's32[1]{0}', space=sflag, size = 0x4, scoped, tag = 'scoped memory for tpu_custom_call.1']
    #allocation5 [shape = 'u8[8192]{0}', space=vmem, size = 0x2000, scoped, tag = 'output window, operand 0, single buffered']
    %6 = vsyncpa [#allocation3], 0
    %7 = vsyncpa [#allocation4], 0
    // Predicated region
    $region2: #{tpu_custom_call.1} parent=1 // pred_check
      _
    $region3: #{tpu_custom_call.1} parent=1 // pred_check_branch
      %9 = sbr.rel (0) target = $region5
    $region4: #{tpu_custom_call.1} parent=1 // pred_region
      %s11 = ssub.s32 256, 256
      %12 = vsyncadd [#allocation3], %s11
      %s14 = sshll.u32 [#allocation2], 4
      %s15 = int_to_ptr.vmem [resolvable:$true] %s14
      %17 = dma.hbm_to_vmem [thread:$0]  %s0, 256, %s15, [#allocation3]
    $region5: #{tpu_custom_call.1} parent=1 // pred_fallthru
      _
    // Predicated region
    $region6: #{tpu_custom_call.1} parent=1 // pred_check
      _
    $region7: #{tpu_custom_call.1} parent=1 // pred_check_branch
      %19 = sbr.rel (0) target = $region9
    $region8: #{tpu_custom_call.1} parent=1 // pred_region
      %20 = dma.done [#allocation3], 256
    $region9: #{tpu_custom_call.1} parent=1 // pred_fallthru
      _
    %v21 = vld [vmem:[#allocation2] sm:$0xff]
    %v22 = vld [vmem:[#allocation2 + $0x8] sm:$0xff]
    %23 = vst [vmem:[#allocation5] sm:$0xff] %v21
    %24 = vst [vmem:[#allocation5 + $0x8] sm:$0xff] %v22
    // Predicated region
    $region10: #{tpu_custom_call.1} parent=1 // pred_check
      _
    $region11: #{tpu_custom_call.1} parent=1 // pred_check_branch
      %26 = sbr.rel (0) target = $region13
    $region12: #{tpu_custom_call.1} parent=1 // pred_region
      %s28 = ssub.s32 256, 256
      %29 = vsyncadd [#allocation4], %s28
      %s31 = sshll.u32 [#allocation5], 4
      %s32 = int_to_ptr.vmem [resolvable:$true] %s31
      %34 = dma.vmem_to_hbm [thread:$0]  %s32, 256, %s1, [#allocation4]
    $region13: #{tpu_custom_call.1} parent=1 // pred_fallthru
      _
    // Predicated region
    $region14: #{tpu_custom_call.1} parent=1 // pred_check
      _
    $region15: #{tpu_custom_call.1} parent=1 // pred_check_branch
      %36 = sbr.rel (0) target = $region17
    $region16: #{tpu_custom_call.1} parent=1 // pred_region
      %37 = dma.done [#allocation4], 256
    $region17: #{tpu_custom_call.1} parent=1 // pred_fallthru
      _
    %38 = vsyncpa [#allocation3], 1
    %39 = vsyncpa [#allocation4], 1

</llo_original>
